<compile_context>
chip_gen: v5e
topology: v5e:2x2
jax: 0.10.0
libtpu: 0.0.40
codegen_flags: <defaults>
</compile_context>

<pallas_src>
import functools

import jax
import jax.numpy as jnp
from jax.experimental import pallas as pl
from jax.experimental.pallas import tpu as pltpu


def glu_mlp_kernel(x_ref, w1a_ref, w1g_ref, b1a_ref, b1g_ref, w2_ref, b2_ref,
                   o_ref, *, h_chunk):
    x = x_ref[...]
    tm = x.shape[0]
    half = w1a_ref.shape[1]
    dout = o_ref.shape[1]

    acc = jnp.zeros((tm, dout), jnp.float32)
    # Static loop over H/2 column chunks (single iteration when H/2 <= h_chunk).
    # Each chunk: two fc1 half-matmuls (MXU), sigmoid gate (EUP) * value (VPU),
    # then the fc2 partial product accumulated in f32.
    for start in range(0, half, h_chunk):
        stop = min(start + h_chunk, half)
        a = jnp.dot(x, w1a_ref[:, start:stop], preferred_element_type=jnp.float32)
        g = jnp.dot(x, w1g_ref[:, start:stop], preferred_element_type=jnp.float32)
        a = a + b1a_ref[:, start:stop]
        g = g + b1g_ref[:, start:stop]
        # GLU gating in f32; cast only for the fc2 MXU feed.
        gated = a * jax.nn.sigmoid(g)
        acc = acc + jnp.dot(gated.astype(w2_ref.dtype), w2_ref[start:stop, :],
                            preferred_element_type=jnp.float32)

    o_ref[...] = (acc + b2_ref[...]).astype(o_ref.dtype)


def _round_up(x, m):
    return (x + m - 1) // m * m


def glu_mlp(x2d, w1, b1, w2, b2, *, tm=256, h_chunk=512,
            single_buffer_weights=True, vmem_limit_bytes=64 * 1024 * 1024):
    """Fused GLU-MLP.

    x2d: (N, Din); w1: (Din, H); b1: (1, H); w2: (H//2, Dout); b2: (1, Dout).
    Weights are stored pre-transposed for row-major `x @ W` matmuls.
    """
    N, Din = x2d.shape
    H = w1.shape[1]
    assert H % 2 == 0, "hidden_features must be even for GLU"
    half = H // 2
    Dout = w2.shape[1]
    assert w2.shape[0] == half

    # Pre-split fc1 into value / gate halves on the host: removes the in-kernel
    # lane-dim slice at offset H/2 and halves the peak fc1 intermediate.
    w1a, w1g = w1[:, :half], w1[:, half:]
    b1a, b1g = b1[:, :half], b1[:, half:]

    # Token tile: big enough to feed the MXU, clamped to the (8-rounded) token
    # count so tiny inputs do not pay for a full padded 256-row tile.
    tm = max(8, min(_round_up(tm, 8), _round_up(N, 8)))
    n_pad = _round_up(N, tm)
    if n_pad != N:
        x2d = jnp.pad(x2d, ((0, n_pad - N), (0, 0)))
    grid = (n_pad // tm,)

    # H/2 chunking of the fc1 + gate + fc2 pipeline bounds vreg pressure at large H.
    h_chunk = min(h_chunk, half)

    weight_mode = {}
    if single_buffer_weights:
        # Weights/biases are revisited every grid step (constant index_map);
        # single-buffer them so VMEM is not wasted on a second resident copy.
        weight_mode = dict(pipeline_mode=pl.Buffered(1))

    def const_spec(shape):
        return pl.BlockSpec(shape, lambda i: (0,) * len(shape), **weight_mode)

    kernel = functools.partial(glu_mlp_kernel, h_chunk=h_chunk)

    out = pl.pallas_call(
        kernel,
        out_shape=jax.ShapeDtypeStruct((n_pad, Dout), x2d.dtype),
        grid_spec=pltpu.PrefetchScalarGridSpec(
            num_scalar_prefetch=0,
            grid=grid,
            in_specs=[
                pl.BlockSpec((tm, Din), lambda i: (i, 0)),  # x tile (streamed)
                const_spec((Din, half)),                    # W1 value half (resident)
                const_spec((Din, half)),                    # W1 gate half (resident)
                const_spec((1, half)),                      # b1 value half
                const_spec((1, half)),                      # b1 gate half
                const_spec((half, Dout)),                   # W2 (resident)
                const_spec((1, Dout)),                      # b2
            ],
            out_specs=pl.BlockSpec((tm, Dout), lambda i: (i, 0)),
        ),
        compiler_params=pltpu.CompilerParams(
            dimension_semantics=("parallel",),   # shard token grid across TCs (v7x)
            vmem_limit_bytes=vmem_limit_bytes,   # lift 16/32 MiB scoped default
        ),
    )(x2d, w1a, w1g, b1a, b1g, w2, b2)

    return out[:N] if n_pad != N else out


def glu_mlp_reference(x2d, w1, b1, w2, b2):
    h = x2d @ w1 + b1
    half = h.shape[-1] // 2
    a, g = h[:, :half], h[:, half:]
    return (a * jax.nn.sigmoid(g)) @ w2 + b2


def _run_kernel(x2d, w1, b1, w2, b2, **kw):
    # Prefer single-buffered resident weights; fall back to the default
    # double-buffered specs if this jax build rejects pl.Buffered(1).
    try:
        return glu_mlp(x2d, w1, b1, w2, b2, **kw)
    except Exception:
        return glu_mlp(x2d, w1, b1, w2, b2, single_buffer_weights=False, **kw)


def _make_params(key, din, hidden, dout):
    half = hidden // 2
    kw1, kb1, kw2, kb2 = jax.random.split(key, 4)
    w1 = jax.random.normal(kw1, (din, hidden), dtype=jnp.float32) * 0.02
    b1 = jax.random.normal(kb1, (1, hidden), dtype=jnp.float32) * 0.02
    w2 = jax.random.normal(kw2, (half, dout), dtype=jnp.float32) * 0.02
    b2 = jax.random.normal(kb2, (1, dout), dtype=jnp.float32) * 0.02
    # Mimic GluMlp.init_weights(): gate-half bias -> 1, gate-half weight ~ N(0, 1e-6)
    b1 = b1.at[:, half:].set(1.0)
    w1 = w1.at[:, half:].set(
        jax.random.normal(jax.random.PRNGKey(1), (din, half), dtype=jnp.float32) * 1e-6)
    return w1, b1, w2, b2


if __name__ == "__main__":
    # TODO(synk): use_conv=True (1x1 Conv2d, chunk along dim=1) path not implemented;
    # this kernel covers the nn.Linear (channels-last) path of the module.

    # --- Test 1: small shapes consistent with the module ---------------------
    # batch=2, seq=8, in_features=32, hidden_features=32, out_features=32.
    B, S, Din = 2, 8, 32
    H, Dout = 32, 32

    key = jax.random.PRNGKey(0)
    kx, kp = jax.random.split(key, 2)
    x = jax.random.normal(kx, (B, S, Din), dtype=jnp.float32)
    w1, b1, w2, b2 = _make_params(kp, Din, H, Dout)

    x2d = x.reshape(B * S, Din)
    y2d = _run_kernel(x2d, w1, b1, w2, b2)
    y = y2d.reshape(B, S, Dout)
    jax.block_until_ready(y)

    y_ref = glu_mlp_reference(x2d, w1, b1, w2, b2).reshape(B, S, Dout)
    assert y.shape == y_ref.shape
    assert jnp.allclose(y, y_ref, atol=1e-5, rtol=1e-5), "mismatch vs reference (test 1)"

    # --- Test 2: exercise token padding, multi-step grid, and H/2 chunking ---
    N2, Din2, H2, Dout2 = 300, 32, 64, 48
    k2x, k2p = jax.random.split(jax.random.PRNGKey(2), 2)
    x2 = jax.random.normal(k2x, (N2, Din2), dtype=jnp.float32)
    w1_2, b1_2, w2_2, b2_2 = _make_params(k2p, Din2, H2, Dout2)

    y2 = _run_kernel(x2, w1_2, b1_2, w2_2, b2_2, tm=128, h_chunk=16)
    jax.block_until_ready(y2)
    y2_ref = glu_mlp_reference(x2, w1_2, b1_2, w2_2, b2_2)
    assert y2.shape == y2_ref.shape
    assert jnp.allclose(y2, y2_ref, atol=1e-5, rtol=1e-5), "mismatch vs reference (test 2)"

    print("KERNEL_OK")
</pallas_src>

<mosaic_0001>
module attributes {stable_mosaic.version = 11 : i64} {
  func.func @glu_mlp_kernel(%arg0: i32, %arg1: memref<16x32xf32, #tpu.memory_space<vmem>>, %arg2: memref<32x16xf32, #tpu.memory_space<vmem>>, %arg3: memref<32x16xf32, #tpu.memory_space<vmem>>, %arg4: memref<1x16xf32, #tpu.memory_space<vmem>>, %arg5: memref<1x16xf32, #tpu.memory_space<vmem>>, %arg6: memref<16x32xf32, #tpu.memory_space<vmem>>, %arg7: memref<1x32xf32, #tpu.memory_space<vmem>>, %arg8: memref<16x32xf32, #tpu.memory_space<vmem>>) attributes {dimension_semantics = [#tpu.dimension_semantics<parallel>], iteration_bounds = array<i64: 1>, scalar_prefetch = 0 : i64, scratch_operands = 0 : i64, tpu.core_type = #tpu.core_type<tc>, window_params = [{transform_indices = @transform_0, window_bounds = array<i64: 16, 32>}, {pipeline_mode = #tpu.pipeline_mode<synchronous>, transform_indices = @transform_1, window_bounds = array<i64: 32, 16>}, {pipeline_mode = #tpu.pipeline_mode<synchronous>, transform_indices = @transform_2, window_bounds = array<i64: 32, 16>}, {pipeline_mode = #tpu.pipeline_mode<synchronous>, transform_indices = @transform_3, window_bounds = array<i64: 1, 16>}, {pipeline_mode = #tpu.pipeline_mode<synchronous>, transform_indices = @transform_4, window_bounds = array<i64: 1, 16>}, {pipeline_mode = #tpu.pipeline_mode<synchronous>, transform_indices = @transform_5, window_bounds = array<i64: 16, 32>}, {pipeline_mode = #tpu.pipeline_mode<synchronous>, transform_indices = @transform_6, window_bounds = array<i64: 1, 32>}, {transform_indices = @transform_7, window_bounds = array<i64: 16, 32>}]} {
    %c0 = arith.constant 0 : index
    %c0_0 = arith.constant 0 : index
    %0 = vector.load %arg1[%c0, %c0_0] : memref<16x32xf32, #tpu.memory_space<vmem>>, vector<16x32xf32>
    %cst = arith.constant 0.000000e+00 : f32
    %1 = vector.broadcast %cst : f32 to vector<16x32xf32>
    %c0_1 = arith.constant 0 : index
    %c0_2 = arith.constant 0 : index
    %2 = vector.load %arg2[%c0_1, %c0_2] : memref<32x16xf32, #tpu.memory_space<vmem>>, vector<32x16xf32>
    %cst_3 = arith.constant dense<0.000000e+00> : vector<16x16xf32>
    %3 = tpu.matmul %0, %2, %cst_3 {dimension_numbers = #tpu.dot_dimension_numbers<[1], [0], [0], [1], [0, 0, 1, 1], [], []>} : vector<16x32xf32>, vector<32x16xf32>, vector<16x16xf32> -> vector<16x16xf32>
    %c0_4 = arith.constant 0 : index
    %c0_5 = arith.constant 0 : index
    %4 = vector.load %arg3[%c0_4, %c0_5] : memref<32x16xf32, #tpu.memory_space<vmem>>, vector<32x16xf32>
    %cst_6 = arith.constant dense<0.000000e+00> : vector<16x16xf32>
    %5 = tpu.matmul %0, %4, %cst_6 {dimension_numbers = #tpu.dot_dimension_numbers<[1], [0], [0], [1], [0, 0, 1, 1], [], []>} : vector<16x32xf32>, vector<32x16xf32>, vector<16x16xf32> -> vector<16x16xf32>
    %c0_7 = arith.constant 0 : index
    %c0_8 = arith.constant 0 : index
    %6 = vector.load %arg4[%c0_7, %c0_8] : memref<1x16xf32, #tpu.memory_space<vmem>>, vector<1x16xf32>
    %7 = vector.broadcast %6 : vector<1x16xf32> to vector<16x16xf32>
    %8 = arith.addf %3, %7 : vector<16x16xf32>
    %c0_9 = arith.constant 0 : index
    %c0_10 = arith.constant 0 : index
    %9 = vector.load %arg5[%c0_9, %c0_10] : memref<1x16xf32, #tpu.memory_space<vmem>>, vector<1x16xf32>
    %10 = vector.broadcast %9 : vector<1x16xf32> to vector<16x16xf32>
    %11 = arith.addf %5, %10 : vector<16x16xf32>
    %12 = arith.negf %11 : vector<16x16xf32>
    %13 = math.exp %12 : vector<16x16xf32>
    %cst_11 = arith.constant 1.000000e+00 : f32
    %14 = vector.broadcast %cst_11 : f32 to vector<16x16xf32>
    %15 = arith.addf %14, %13 : vector<16x16xf32>
    %16 = arith.divf %14, %15 : vector<16x16xf32>
    %17 = arith.mulf %8, %16 : vector<16x16xf32>
    %c0_12 = arith.constant 0 : index
    %c0_13 = arith.constant 0 : index
    %18 = vector.load %arg6[%c0_12, %c0_13] : memref<16x32xf32, #tpu.memory_space<vmem>>, vector<16x32xf32>
    %cst_14 = arith.constant dense<0.000000e+00> : vector<16x32xf32>
    %19 = tpu.matmul %17, %18, %cst_14 {dimension_numbers = #tpu.dot_dimension_numbers<[1], [0], [0], [1], [0, 0, 1, 1], [], []>} : vector<16x16xf32>, vector<16x32xf32>, vector<16x32xf32> -> vector<16x32xf32>
    %20 = arith.addf %1, %19 : vector<16x32xf32>
    %c0_15 = arith.constant 0 : index
    %c0_16 = arith.constant 0 : index
    %21 = vector.load %arg7[%c0_15, %c0_16] : memref<1x32xf32, #tpu.memory_space<vmem>>, vector<1x32xf32>
    %22 = vector.broadcast %21 : vector<1x32xf32> to vector<16x32xf32>
    %23 = arith.addf %20, %22 : vector<16x32xf32>
    %c0_17 = arith.constant 0 : index
    %c0_18 = arith.constant 0 : index
    %24 = vector.load %arg8[%c0_17, %c0_18] : memref<16x32xf32, #tpu.memory_space<vmem>>, vector<16x32xf32>
    tpu.vector_store %arg8[%c0_17, %c0_18], %23 {strides = array<i32>} : memref<16x32xf32, #tpu.memory_space<vmem>>, vector<16x32xf32>,
    return
  }
  func.func @transform_0(%arg0: i32) -> (i32, i32) {
    %c0_i32 = arith.constant 0 : i32
    %c0_i32_0 = arith.constant 0 : i32
    return %arg0, %c0_i32 : i32, i32
  }
  func.func @transform_1(%arg0: i32) -> (i32, i32) {
    %c0_i32 = arith.constant 0 : i32
    %c0_i32_0 = arith.constant 0 : i32
    %c0_i32_1 = arith.constant 0 : i32
    return %c0_i32, %c0_i32_0 : i32, i32
  }
  func.func @transform_2(%arg0: i32) -> (i32, i32) {
    %c0_i32 = arith.constant 0 : i32
    %c0_i32_0 = arith.constant 0 : i32
    %c0_i32_1 = arith.constant 0 : i32
    return %c0_i32, %c0_i32_0 : i32, i32
  }
  func.func @transform_3(%arg0: i32) -> (i32, i32) {
    %c0_i32 = arith.constant 0 : i32
    %c0_i32_0 = arith.constant 0 : i32
    %c0_i32_1 = arith.constant 0 : i32
    return %c0_i32, %c0_i32_0 : i32, i32
  }
  func.func @transform_4(%arg0: i32) -> (i32, i32) {
    %c0_i32 = arith.constant 0 : i32
    %c0_i32_0 = arith.constant 0 : i32
    %c0_i32_1 = arith.constant 0 : i32
    return %c0_i32, %c0_i32_0 : i32, i32
  }
  func.func @transform_5(%arg0: i32) -> (i32, i32) {
    %c0_i32 = arith.constant 0 : i32
    %c0_i32_0 = arith.constant 0 : i32
    %c0_i32_1 = arith.constant 0 : i32
    return %c0_i32, %c0_i32_0 : i32, i32
  }
  func.func @transform_6(%arg0: i32) -> (i32, i32) {
    %c0_i32 = arith.constant 0 : i32
    %c0_i32_0 = arith.constant 0 : i32
    %c0_i32_1 = arith.constant 0 : i32
    return %c0_i32, %c0_i32_0 : i32, i32
  }
  func.func @transform_7(%arg0: i32) -> (i32, i32) {
    %c0_i32 = arith.constant 0 : i32
    %c0_i32_0 = arith.constant 0 : i32
    return %arg0, %c0_i32 : i32, i32
  }
}

module attributes {stable_mosaic.version = 11 : i64} {
  func.func @glu_mlp_kernel(%arg0: i32, %arg1: memref<16x32xf32, #tpu.memory_space<vmem>>, %arg2: memref<32x16xf32, #tpu.memory_space<vmem>>, %arg3: memref<32x16xf32, #tpu.memory_space<vmem>>, %arg4: memref<1x16xf32, #tpu.memory_space<vmem>>, %arg5: memref<1x16xf32, #tpu.memory_space<vmem>>, %arg6: memref<16x32xf32, #tpu.memory_space<vmem>>, %arg7: memref<1x32xf32, #tpu.memory_space<vmem>>, %arg8: memref<16x32xf32, #tpu.memory_space<vmem>>) attributes {dimension_semantics = [#tpu.dimension_semantics<parallel>], iteration_bounds = array<i64: 1>, scalar_prefetch = 0 : i64, scratch_operands = 0 : i64, tpu.core_type = #tpu.core_type<tc>, window_params = [{transform_indices = @transform_0, window_bounds = array<i64: 16, 32>}, {pipeline_mode = #tpu.pipeline_mode<synchronous>, transform_indices = @transform_1, window_bounds = array<i64: 32, 16>}, {pipeline_mode = #tpu.pipeline_mode<synchronous>, transform_indices = @transform_2, window_bounds = array<i64: 32, 16>}, {pipeline_mode = #tpu.pipeline_mode<synchronous>, transform_indices = @transform_3, window_bounds = array<i64: 1, 16>}, {pipeline_mode = #tpu.pipeline_mode<synchronous>, transform_indices = @transform_4, window_bounds = array<i64: 1, 16>}, {pipeline_mode = #tpu.pipeline_mode<synchronous>, transform_indices = @transform_5, window_bounds = array<i64: 16, 32>}, {pipeline_mode = #tpu.pipeline_mode<synchronous>, transform_indices = @transform_6, window_bounds = array<i64: 1, 32>}, {transform_indices = @transform_7, window_bounds = array<i64: 16, 32>}]} {
    %c0 = arith.constant 0 : index
    %c0_0 = arith.constant 0 : index
    %0 = vector.load %arg1[%c0, %c0_0] : memref<16x32xf32, #tpu.memory_space<vmem>>, vector<16x32xf32>
    %cst = arith.constant 0.000000e+00 : f32
    %1 = vector.broadcast %cst : f32 to vector<16x32xf32>
    %c0_1 = arith.constant 0 : index
    %c0_2 = arith.constant 0 : index
    %2 = vector.load %arg2[%c0_1, %c0_2] : memref<32x16xf32, #tpu.memory_space<vmem>>, vector<32x16xf32>
    %cst_3 = arith.constant dense<0.000000e+00> : vector<16x16xf32>
    %3 = tpu.matmul %0, %2, %cst_3 {dimension_numbers = #tpu.dot_dimension_numbers<[1], [0], [0], [1], [0, 0, 1, 1], [], []>} : vector<16x32xf32>, vector<32x16xf32>, vector<16x16xf32> -> vector<16x16xf32>
    %c0_4 = arith.constant 0 : index
    %c0_5 = arith.constant 0 : index
    %4 = vector.load %arg3[%c0_4, %c0_5] : memref<32x16xf32, #tpu.memory_space<vmem>>, vector<32x16xf32>
    %cst_6 = arith.constant dense<0.000000e+00> : vector<16x16xf32>
    %5 = tpu.matmul %0, %4, %cst_6 {dimension_numbers = #tpu.dot_dimension_numbers<[1], [0], [0], [1], [0, 0, 1, 1], [], []>} : vector<16x32xf32>, vector<32x16xf32>, vector<16x16xf32> -> vector<16x16xf32>
    %c0_7 = arith.constant 0 : index
    %c0_8 = arith.constant 0 : index
    %6 = vector.load %arg4[%c0_7, %c0_8] : memref<1x16xf32, #tpu.memory_space<vmem>>, vector<1x16xf32>
    %7 = vector.broadcast %6 : vector<1x16xf32> to vector<16x16xf32>
    %8 = arith.addf %3, %7 : vector<16x16xf32>
    %c0_9 = arith.constant 0 : index
    %c0_10 = arith.constant 0 : index
    %9 = vector.load %arg5[%c0_9, %c0_10] : memref<1x16xf32, #tpu.memory_space<vmem>>, vector<1x16xf32>
    %10 = vector.broadcast %9 : vector<1x16xf32> to vector<16x16xf32>
    %11 = arith.addf %5, %10 : vector<16x16xf32>
    %12 = arith.negf %11 : vector<16x16xf32>
    %13 = math.exp %12 : vector<16x16xf32>
    %cst_11 = arith.constant 1.000000e+00 : f32
    %14 = vector.broadcast %cst_11 : f32 to vector<16x16xf32>
    %15 = arith.addf %14, %13 : vector<16x16xf32>
    %16 = arith.divf %14, %15 : vector<16x16xf32>
    %17 = arith.mulf %8, %16 : vector<16x16xf32>
    %c0_12 = arith.constant 0 : index
    %c0_13 = arith.constant 0 : index
    %18 = vector.load %arg6[%c0_12, %c0_13] : memref<16x32xf32, #tpu.memory_space<vmem>>, vector<16x32xf32>
    %cst_14 = arith.constant dense<0.000000e+00> : vector<16x32xf32>
    %19 = tpu.matmul %17, %18, %cst_14 {dimension_numbers = #tpu.dot_dimension_numbers<[1], [0], [0], [1], [0, 0, 1, 1], [], []>} : vector<16x16xf32>, vector<16x32xf32>, vector<16x32xf32> -> vector<16x32xf32>
    %20 = arith.addf %1, %19 : vector<16x32xf32>
    %c0_15 = arith.constant 0 : index
    %c0_16 = arith.constant 0 : index
    %21 = vector.load %arg7[%c0_15, %c0_16] : memref<1x32xf32, #tpu.memory_space<vmem>>, vector<1x32xf32>
    %22 = vector.broadcast %21 : vector<1x32xf32> to vector<16x32xf32>
    %23 = arith.addf %20, %22 : vector<16x32xf32>
    %c0_17 = arith.constant 0 : index
    %c0_18 = arith.constant 0 : index
    %24 = vector.load %arg8[%c0_17, %c0_18] : memref<16x32xf32, #tpu.memory_space<vmem>>, vector<16x32xf32>
    tpu.vector_store %arg8[%c0_17, %c0_18], %23 {strides = array<i32>} : memref<16x32xf32, #tpu.memory_space<vmem>>, vector<16x32xf32>,
    return
  }
  func.func @transform_0(%arg0: i32) -> (i32, i32) {
    %c0_i32 = arith.constant 0 : i32
    %c0_i32_0 = arith.constant 0 : i32
    return %arg0, %c0_i32 : i32, i32
  }
  func.func @transform_1(%arg0: i32) -> (i32, i32) {
    %c0_i32 = arith.constant 0 : i32
    %c0_i32_0 = arith.constant 0 : i32
    %c0_i32_1 = arith.constant 0 : i32
    return %c0_i32, %c0_i32_0 : i32, i32
  }
  func.func @transform_2(%arg0: i32) -> (i32, i32) {
    %c0_i32 = arith.constant 0 : i32
    %c0_i32_0 = arith.constant 0 : i32
    %c0_i32_1 = arith.constant 0 : i32
    return %c0_i32, %c0_i32_0 : i32, i32
  }
  func.func @transform_3(%arg0: i32) -> (i32, i32) {
    %c0_i32 = arith.constant 0 : i32
    %c0_i32_0 = arith.constant 0 : i32
    %c0_i32_1 = arith.constant 0 : i32
    return %c0_i32, %c0_i32_0 : i32, i32
  }
  func.func @transform_4(%arg0: i32) -> (i32, i32) {
    %c0_i32 = arith.constant 0 : i32
    %c0_i32_0 = arith.constant 0 : i32
    %c0_i32_1 = arith.constant 0 : i32
    return %c0_i32, %c0_i32_0 : i32, i32
  }
  func.func @transform_5(%arg0: i32) -> (i32, i32) {
    %c0_i32 = arith.constant 0 : i32
    %c0_i32_0 = arith.constant 0 : i32
    %c0_i32_1 = arith.constant 0 : i32
    return %c0_i32, %c0_i32_0 : i32, i32
  }
  func.func @transform_6(%arg0: i32) -> (i32, i32) {
    %c0_i32 = arith.constant 0 : i32
    %c0_i32_0 = arith.constant 0 : i32
    %c0_i32_1 = arith.constant 0 : i32
    return %c0_i32, %c0_i32_0 : i32, i32
  }
  func.func @transform_7(%arg0: i32) -> (i32, i32) {
    %c0_i32 = arith.constant 0 : i32
    %c0_i32_0 = arith.constant 0 : i32
    return %arg0, %c0_i32 : i32, i32
  }
}

</mosaic_0001>

<llo_original>
// kernel: tpu_custom_call.1
$region0: #{tpu_custom_call.1}
  #allocation0 [shape = 'u32[]', space=smem, size = 0x4, offset = 0x4, fixed_abs, tag = 'smem constant byte address 0x4 - core index']
  #allocation1 [shape = 'u32[72,128]{1,0:T(1,128)}', space=vmem, size = 0x9000, scoped, tag = 'internal scratch']
  %s0 = inlined_call_operand.vmem [shape: f32[16,32], index: 0, kind: input, shape index: {}]
  %s1 = inlined_call_operand.vmem [shape: f32[32,16], index: 1, kind: input, shape index: {}]
  %s2 = inlined_call_operand.vmem [shape: f32[32,16], index: 2, kind: input, shape index: {}]
  %s3 = inlined_call_operand.vmem [shape: f32[1,16], index: 3, kind: input, shape index: {}]
  %s4 = inlined_call_operand.vmem [shape: f32[1,16], index: 4, kind: input, shape index: {}]
  %s5 = inlined_call_operand.vmem [shape: f32[16,32], index: 5, kind: input, shape index: {}]
  %s6 = inlined_call_operand.vmem [shape: f32[1,32], index: 6, kind: input, shape index: {}]
  %s7 = inlined_call_operand.hbm [shape: f32[16,32], index: 7, kind: output, shape index: {}]
  %s8 = sld [smem:[#allocation0]]
  $region38: #{tpu_custom_call.1} parent=0
    _
  %s10 = ssub.s32 1, %s8
  %s11 = scalar_select 0, %s10, %s8
  $region1: #{tpu_custom_call.1} parent=0
    #allocation2 [shape = 'u8[8192]{0}', space=vmem, size = 0x2000, scoped, tag = 'output window, operand 0, single buffered']
    #allocation3 [shape = 's32[1]{0}', space=sflag, size = 0x4, scoped, tag = 'scoped memory for tpu_custom_call.1']
    %12 = vsyncpa [#allocation3], 0
    // Predicated region
    $region2: #{tpu_custom_call.1} parent=1 // pred_check
      _
    $region3: #{tpu_custom_call.1} parent=1 // pred_check_branch
      %14 = sbr.rel (0) target = $region5
    $region4: #{tpu_custom_call.1} parent=1 // pred_region
      _
    $region5: #{tpu_custom_call.1} parent=1 // pred_fallthru
      _
    // Predicated region
    $region6: #{tpu_custom_call.1} parent=1 // pred_check
      _
    $region7: #{tpu_custom_call.1} parent=1 // pred_check_branch
      %16 = sbr.rel (0) target = $region9
    $region8: #{tpu_custom_call.1} parent=1 // pred_region
      _
    $region9: #{tpu_custom_call.1} parent=1 // pred_fallthru
      _
    // Predicated region
    $region10: #{tpu_custom_call.1} parent=1 // pred_check
      _
    $region11: #{tpu_custom_call.1} parent=1 // pred_check_branch
      %18 = sbr.rel (0) target = $region13
    $region12: #{tpu_custom_call.1} parent=1 // pred_region
      _
    $region13: #{tpu_custom_call.1} parent=1 // pred_fallthru
      _
    // Predicated region
    $region14: #{tpu_custom_call.1} parent=1 // pred_check
      _
    $region15: #{tpu_custom_call.1} parent=1 // pred_check_branch
      %20 = sbr.rel (0) target = $region17
    $region16: #{tpu_custom_call.1} parent=1 // pred_region
      _
    $region17: #{tpu_custom_call.1} parent=1 // pred_fallthru
      _
    // Predicated region
    $region18: #{tpu_custom_call.1} parent=1 // pred_check
      _
    $region19: #{tpu_custom_call.1} parent=1 // pred_check_branch
      %22 = sbr.rel (0) target = $region21
    $region20: #{tpu_custom_call.1} parent=1 // pred_region
      _
    $region21: #{tpu_custom_call.1} parent=1 // pred_fallthru
      _
    // Predicated region
    $region22: #{tpu_custom_call.1} parent=1 // pred_check
      _
    $region23: #{tpu_custom_call.1} parent=1 // pred_check_branch
      %24 = sbr.rel (0) target = $region25
    $region24: #{tpu_custom_call.1} parent=1 // pred_region
      _
    $region25: #{tpu_custom_call.1} parent=1 // pred_fallthru
      _
    // Predicated region
    $region26: #{tpu_custom_call.1} parent=1 // pred_check
      _
    $region27: #{tpu_custom_call.1} parent=1 // pred_check_branch
      %26 = sbr.rel (0) target = $region29
    $region28: #{tpu_custom_call.1} parent=1 // pred_region
      _
    $region29: #{tpu_custom_call.1} parent=1 // pred_fallthru
      _
    %v27 = vld [vmem:[%s0] sm:$0xff]
    %v28 = vld [vmem:[%s0 + $0x8] sm:$0xff]
    %v29 = vld [vmem:[%s1] sm:$0xff]
    %v30 = vld [vmem:[%s1 + $0x8] sm:$0xff]
    %v31 = vld [vmem:[%s1 + $0x10] sm:$0xff]
    %v32 = vld [vmem:[%s1 + $0x18] sm:$0xff]
    %v33 = vld [vmem:[%s2] sm:$0xff]
    %v34 = vld [vmem:[%s2 + $0x8] sm:$0xff]
    %v35 = vld [vmem:[%s2 + $0x10] sm:$0xff]
    %v36 = vld [vmem:[%s2 + $0x18] sm:$0xff]
    %v37 = vld [vmem:[%s3] sm:$0x1]
    %v39 = vperm.slane %v37, 0
    %vm41 = vcmask 261120
    %v43 = vsel %vm41, %v27, 0
    %v46 = vsel %vm41, %v28, 0
    %48 = vmatpush.msra.mxu0 0.0
    %49 = vmatpush.msra.mxu0 0.0
    %50 = vmatpush.msra.mxu0 0.0
    %51 = vmatpush.msra.mxu0 0.0
    %52 = vmatpush.msra.mxu0 0.0
    %53 = vmatpush.msra.mxu0 0.0
    %54 = vmatpush.msra.mxu0 0.0
    %55 = vmatpush.msra.mxu0 0.0
    %56 = vmatpush.msra.mxu0 0.0
    %57 = vmatpush.msra.mxu0 0.0
    %58 = vmatpush.msra.mxu0 0.0
    %59 = vmatpush.msra.mxu0 0.0
    %60 = vmatpush.msra.mxu0 %v32
    %61 = vmatpush.msra.mxu0 %v31
    %62 = vmatpush.msra.mxu0 %v30
    %63 = vmatpush.msra.mxu0 %v29
    %64 = vmatmul.f32.gmra.mxu0 %v43
    %v65 = vpop.f32.mrf.mxu0
    %v66 = vadd.f32 %v39, %v65
    %67 = vmatmul.f32.gmra.mxu0 %v46
    %v68 = vpop.f32.mrf.mxu0
    %v69 = vadd.f32 %v39, %v68
    %70 = vdwg.mxu0
    %v71 = vld [vmem:[%s4] sm:$0x1]
    %v73 = vperm.slane %v71, 0
    %75 = vmatpush.msra.mxu0 0.0
    %76 = vmatpush.msra.mxu0 0.0
    %77 = vmatpush.msra.mxu0 0.0
    %78 = vmatpush.msra.mxu0 0.0
    %79 = vmatpush.msra.mxu0 0.0
    %80 = vmatpush.msra.mxu0 0.0
    %81 = vmatpush.msra.mxu0 0.0
    %82 = vmatpush.msra.mxu0 0.0
    %83 = vmatpush.msra.mxu0 0.0
    %84 = vmatpush.msra.mxu0 0.0
    %85 = vmatpush.msra.mxu0 0.0
    %86 = vmatpush.msra.mxu0 0.0
    %87 = vmatpush.msra.mxu0 %v36
    %88 = vmatpush.msra.mxu0 %v35
    %89 = vmatpush.msra.mxu0 %v34
    %90 = vmatpush.msra.mxu0 %v33
    %91 = vmatmul.f32.gmra.mxu0 %v43
    %v92 = vpop.f32.mrf.mxu0
    %v93 = vadd.f32 %v73, %v92
    %94 = vmatmul.f32.gmra.mxu0 %v46
    %v95 = vpop.f32.mrf.mxu0
    %v96 = vadd.f32 %v73, %v95
    %97 = vdwg.mxu0
    %v98 = vxor.u32 %v93, 2147483648
    %v99 = vxor.u32 %v96, 2147483648
    %v100 = vmul.f32 %v98, 1.442695
    %v101 = vpow.pop %v100
    %v102 = vmul.f32 %v99, 1.442695
    %v103 = vpow.pop %v102
    %v104 = vadd.f32 %v101, 1.0
    %v105 = vadd.f32 %v103, 1.0
    %v106 = vrcp.pop %v104
    %v107 = vmul.f32 %v104, %v106
    %v108 = vsub.f32 1.0, %v107
    %v109 = vmul.f32 %v106, %v108
    %v110 = vadd.f32 %v106, %v109
    %vm111 = vweird.f32 %v104
    %vm112 = vweird.f32 %v106
    %vm113 = vmor %vm111, %vm112
    %v114 = vsel %vm113, %v106, %v110
    %v115 = vand.u32 2147483647, %v104
    %vm116 = vcmp.eq.f32.partialorder %v115, 8.507059e+37
    %v117 = vand.u32 %v104, 2147483648
    %v118 = vor.u32 1.1754944e-38, %v117
    %v119 = vsel %vm116, %v118, %v114
    %v120 = vmul.f32 1.0, %v119
    %v121 = vrcp.pop %v105
    %v122 = vmul.f32 %v105, %v121
    %v123 = vsub.f32 1.0, %v122
    %v124 = vmul.f32 %v121, %v123
    %v125 = vadd.f32 %v121, %v124
    %vm126 = vweird.f32 %v105
    %vm127 = vweird.f32 %v121
    %vm128 = vmor %vm126, %vm127
    %v129 = vsel %vm128, %v121, %v125
    %v130 = vand.u32 2147483647, %v105
    %vm131 = vcmp.eq.f32.partialorder %v130, 8.507059e+37
    %v132 = vand.u32 %v105, 2147483648
    %v133 = vor.u32 1.1754944e-38, %v132
    %v134 = vsel %vm131, %v133, %v129
    %v135 = vmul.f32 1.0, %v134
    %v136 = vmul.f32 %v66, %v120
    %v137 = vmul.f32 %v69, %v135
    %v138 = vld [vmem:[%s5] sm:$0xff]
    %v139 = vld [vmem:[%s5 + $0x8] sm:$0xff]
    %v140 = vld [vmem:[%s6] sm:$0x1]
    %v142 = vperm.slane %v140, 0
    %vm144 = vcmask 130048
    %v146 = vsel %vm144, %v136, 0
    %v149 = vsel %vm144, %v137, 0
    %151 = vmatpush.msra.mxu0 0.0
    %152 = vmatpush.msra.mxu0 0.0
    %153 = vmatpush.msra.mxu0 0.0
    %154 = vmatpush.msra.mxu0 0.0
    %155 = vmatpush.msra.mxu0 0.0
    %156 = vmatpush.msra.mxu0 0.0
    %157 = vmatpush.msra.mxu0 0.0
    %158 = vmatpush.msra.mxu0 0.0
    %159 = vmatpush.msra.mxu0 0.0
    %160 = vmatpush.msra.mxu0 0.0
    %161 = vmatpush.msra.mxu0 0.0
    %162 = vmatpush.msra.mxu0 0.0
    %163 = vmatpush.msra.mxu0 0.0
    %164 = vmatpush.msra.mxu0 0.0
    %165 = vmatpush.msra.mxu0 %v139
    %166 = vmatpush.msra.mxu0 %v138
    %167 = vmatmul.f32.gmra.mxu0 %v146
    %v168 = vpop.f32.mrf.mxu0
    %v169 = vadd.f32 %v142, %v168
    %170 = vmatmul.f32.gmra.mxu0 %v149
    %v171 = vpop.f32.mrf.mxu0
    %v172 = vadd.f32 %v142, %v171
    %173 = vdwg.mxu0
    %174 = vst.msk [vmem:[#allocation2] sm:$0xff] %vm41, %v169
    %175 = vst.msk [vmem:[#allocation2 + $0x8] sm:$0xff] %vm41, %v172
    // Predicated region
    $region30: #{tpu_custom_call.1} parent=1 // pred_check
      _
    $region31: #{tpu_custom_call.1} parent=1 // pred_check_branch
      %177 = sbr.rel (0) target = $region33
    $region32: #{tpu_custom_call.1} parent=1 // pred_region
      %179 = vsyncadd [#allocation3], 0
      %s180 = sshll.u32 [#allocation2], 4
      %s181 = int_to_ptr.vmem [resolvable:$true] %s180
      %s182 = sshll.u32 %s7, 4
      %s183 = int_to_ptr.hbm [resolvable:$true] %s182
      %188 = dma.vmem_to_hbm [thread:$0]  %s181, 256, %s183, [#allocation3], 128, 128, 8
    $region33: #{tpu_custom_call.1} parent=1 // pred_fallthru
      _
    // Predicated region
    $region34: #{tpu_custom_call.1} parent=1 // pred_check
      _
    $region35: #{tpu_custom_call.1} parent=1 // pred_check_branch
      %190 = sbr.rel (0) target = $region37
    $region36: #{tpu_custom_call.1} parent=1 // pred_region
      %192 = dma.done [#allocation3], 256
    $region37: #{tpu_custom_call.1} parent=1 // pred_fallthru
      _
    %193 = vsyncpa [#allocation3], 1

// kernel: tpu_custom_call.1
$region0: #{tpu_custom_call.1}
  #allocation0 [shape = 'u32[]', space=smem, size = 0x4, offset = 0x4, fixed_abs, tag = 'smem constant byte address 0x4 - core index']
  #allocation1 [shape = 'u32[72,128]{1,0:T(1,128)}', space=vmem, size = 0x9000, scoped, tag = 'internal scratch']
  %s0 = inlined_call_operand.vmem [shape: f32[16,32], index: 0, kind: input, shape index: {}]
  %s1 = inlined_call_operand.vmem [shape: f32[32,16], index: 1, kind: input, shape index: {}]
  %s2 = inlined_call_operand.vmem [shape: f32[32,16], index: 2, kind: input, shape index: {}]
  %s3 = inlined_call_operand.vmem [shape: f32[1,16], index: 3, kind: input, shape index: {}]
  %s4 = inlined_call_operand.vmem [shape: f32[1,16], index: 4, kind: input, shape index: {}]
  %s5 = inlined_call_operand.vmem [shape: f32[16,32], index: 5, kind: input, shape index: {}]
  %s6 = inlined_call_operand.vmem [shape: f32[1,32], index: 6, kind: input, shape index: {}]
  %s7 = inlined_call_operand.hbm [shape: f32[16,32], index: 7, kind: output, shape index: {}]
  %s8 = sld [smem:[#allocation0]]
  $region38: #{tpu_custom_call.1} parent=0
    _
  %s10 = ssub.s32 1, %s8
  %s11 = scalar_select 0, %s10, %s8
  $region1: #{tpu_custom_call.1} parent=0
    #allocation2 [shape = 'u8[8192]{0}', space=vmem, size = 0x2000, scoped, tag = 'output window, operand 0, single buffered']
    #allocation3 [shape = 's32[1]{0}', space=sflag, size = 0x4, scoped, tag = 'scoped memory for tpu_custom_call.1']
    %12 = vsyncpa [#allocation3], 0
    // Predicated region
    $region2: #{tpu_custom_call.1} parent=1 // pred_check
      _
    $region3: #{tpu_custom_call.1} parent=1 // pred_check_branch
      %14 = sbr.rel (0) target = $region5
    $region4: #{tpu_custom_call.1} parent=1 // pred_region
      _
    $region5: #{tpu_custom_call.1} parent=1 // pred_fallthru
      _
    // Predicated region
    $region6: #{tpu_custom_call.1} parent=1 // pred_check
      _
    $region7: #{tpu_custom_call.1} parent=1 // pred_check_branch
      %16 = sbr.rel (0) target = $region9
    $region8: #{tpu_custom_call.1} parent=1 // pred_region
      _
    $region9: #{tpu_custom_call.1} parent=1 // pred_fallthru
      _
    // Predicated region
    $region10: #{tpu_custom_call.1} parent=1 // pred_check
      _
    $region11: #{tpu_custom_call.1} parent=1 // pred_check_branch
      %18 = sbr.rel (0) target = $region13
    $region12: #{tpu_custom_call.1} parent=1 // pred_region
      _
    $region13: #{tpu_custom_call.1} parent=1 // pred_fallthru
      _
    // Predicated region
    $region14: #{tpu_custom_call.1} parent=1 // pred_check
      _
    $region15: #{tpu_custom_call.1} parent=1 // pred_check_branch
      %20 = sbr.rel (0) target = $region17
    $region16: #{tpu_custom_call.1} parent=1 // pred_region
      _
    $region17: #{tpu_custom_call.1} parent=1 // pred_fallthru
      _
    // Predicated region
    $region18: #{tpu_custom_call.1} parent=1 // pred_check
      _
    $region19: #{tpu_custom_call.1} parent=1 // pred_check_branch
      %22 = sbr.rel (0) target = $region21
    $region20: #{tpu_custom_call.1} parent=1 // pred_region
      _
    $region21: #{tpu_custom_call.1} parent=1 // pred_fallthru
      _
    // Predicated region
    $region22: #{tpu_custom_call.1} parent=1 // pred_check
      _
    $region23: #{tpu_custom_call.1} parent=1 // pred_check_branch
      %24 = sbr.rel (0) target = $region25
    $region24: #{tpu_custom_call.1} parent=1 // pred_region
      _
    $region25: #{tpu_custom_call.1} parent=1 // pred_fallthru
      _
    // Predicated region
    $region26: #{tpu_custom_call.1} parent=1 // pred_check
      _
    $region27: #{tpu_custom_call.1} parent=1 // pred_check_branch
      %26 = sbr.rel (0) target = $region29
    $region28: #{tpu_custom_call.1} parent=1 // pred_region
      _
    $region29: #{tpu_custom_call.1} parent=1 // pred_fallthru
      _
    %v27 = vld [vmem:[%s0] sm:$0xff]
    %v28 = vld [vmem:[%s0 + $0x8] sm:$0xff]
    %v29 = vld [vmem:[%s1] sm:$0xff]
    %v30 = vld [vmem:[%s1 + $0x8] sm:$0xff]
    %v31 = vld [vmem:[%s1 + $0x10] sm:$0xff]
    %v32 = vld [vmem:[%s1 + $0x18] sm:$0xff]
    %v33 = vld [vmem:[%s2] sm:$0xff]
    %v34 = vld [vmem:[%s2 + $0x8] sm:$0xff]
    %v35 = vld [vmem:[%s2 + $0x10] sm:$0xff]
    %v36 = vld [vmem:[%s2 + $0x18] sm:$0xff]
    %v37 = vld [vmem:[%s3] sm:$0x1]
    %v39 = vperm.slane %v37, 0
    %vm41 = vcmask 261120
    %v43 = vsel %vm41, %v27, 0
    %v46 = vsel %vm41, %v28, 0
    %48 = vmatpush.msra.mxu0 0.0
    %49 = vmatpush.msra.mxu0 0.0
    %50 = vmatpush.msra.mxu0 0.0
    %51 = vmatpush.msra.mxu0 0.0
    %52 = vmatpush.msra.mxu0 0.0
    %53 = vmatpush.msra.mxu0 0.0
    %54 = vmatpush.msra.mxu0 0.0
    %55 = vmatpush.msra.mxu0 0.0
    %56 = vmatpush.msra.mxu0 0.0
    %57 = vmatpush.msra.mxu0 0.0
    %58 = vmatpush.msra.mxu0 0.0
    %59 = vmatpush.msra.mxu0 0.0
    %60 = vmatpush.msra.mxu0 %v32
    %61 = vmatpush.msra.mxu0 %v31
    %62 = vmatpush.msra.mxu0 %v30
    %63 = vmatpush.msra.mxu0 %v29
    %64 = vmatmul.f32.gmra.mxu0 %v43
    %v65 = vpop.f32.mrf.mxu0
    %v66 = vadd.f32 %v39, %v65
    %67 = vmatmul.f32.gmra.mxu0 %v46
    %v68 = vpop.f32.mrf.mxu0
    %v69 = vadd.f32 %v39, %v68
    %70 = vdwg.mxu0
    %v71 = vld [vmem:[%s4] sm:$0x1]
    %v73 = vperm.slane %v71, 0
    %75 = vmatpush.msra.mxu0 0.0
    %76 = vmatpush.msra.mxu0 0.0
    %77 = vmatpush.msra.mxu0 0.0
    %78 = vmatpush.msra.mxu0 0.0
    %79 = vmatpush.msra.mxu0 0.0
    %80 = vmatpush.msra.mxu0 0.0
    %81 = vmatpush.msra.mxu0 0.0
    %82 = vmatpush.msra.mxu0 0.0
    %83 = vmatpush.msra.mxu0 0.0
    %84 = vmatpush.msra.mxu0 0.0
    %85 = vmatpush.msra.mxu0 0.0
    %86 = vmatpush.msra.mxu0 0.0
    %87 = vmatpush.msra.mxu0 %v36
    %88 = vmatpush.msra.mxu0 %v35
    %89 = vmatpush.msra.mxu0 %v34
    %90 = vmatpush.msra.mxu0 %v33
    %91 = vmatmul.f32.gmra.mxu0 %v43
    %v92 = vpop.f32.mrf.mxu0
    %v93 = vadd.f32 %v73, %v92
    %94 = vmatmul.f32.gmra.mxu0 %v46
    %v95 = vpop.f32.mrf.mxu0
    %v96 = vadd.f32 %v73, %v95
    %97 = vdwg.mxu0
    %v98 = vxor.u32 %v93, 2147483648
    %v99 = vxor.u32 %v96, 2147483648
    %v100 = vmul.f32 %v98, 1.442695
    %v101 = vpow.pop %v100
    %v102 = vmul.f32 %v99, 1.442695
    %v103 = vpow.pop %v102
    %v104 = vadd.f32 %v101, 1.0
    %v105 = vadd.f32 %v103, 1.0
    %v106 = vrcp.pop %v104
    %v107 = vmul.f32 %v104, %v106
    %v108 = vsub.f32 1.0, %v107
    %v109 = vmul.f32 %v106, %v108
    %v110 = vadd.f32 %v106, %v109
    %vm111 = vweird.f32 %v104
    %vm112 = vweird.f32 %v106
    %vm113 = vmor %vm111, %vm112
    %v114 = vsel %vm113, %v106, %v110
    %v115 = vand.u32 2147483647, %v104
    %vm116 = vcmp.eq.f32.partialorder %v115, 8.507059e+37
    %v117 = vand.u32 %v104, 2147483648
    %v118 = vor.u32 1.1754944e-38, %v117
    %v119 = vsel %vm116, %v118, %v114
    %v120 = vmul.f32 1.0, %v119
    %v121 = vrcp.pop %v105
    %v122 = vmul.f32 %v105, %v121
    %v123 = vsub.f32 1.0, %v122
    %v124 = vmul.f32 %v121, %v123
    %v125 = vadd.f32 %v121, %v124
    %vm126 = vweird.f32 %v105
    %vm127 = vweird.f32 %v121
    %vm128 = vmor %vm126, %vm127
    %v129 = vsel %vm128, %v121, %v125
    %v130 = vand.u32 2147483647, %v105
    %vm131 = vcmp.eq.f32.partialorder %v130, 8.507059e+37
    %v132 = vand.u32 %v105, 2147483648
    %v133 = vor.u32 1.1754944e-38, %v132
    %v134 = vsel %vm131, %v133, %v129
    %v135 = vmul.f32 1.0, %v134
    %v136 = vmul.f32 %v66, %v120
    %v137 = vmul.f32 %v69, %v135
    %v138 = vld [vmem:[%s5] sm:$0xff]
    %v139 = vld [vmem:[%s5 + $0x8] sm:$0xff]
    %v140 = vld [vmem:[%s6] sm:$0x1]
    %v142 = vperm.slane %v140, 0
    %vm144 = vcmask 130048
    %v146 = vsel %vm144, %v136, 0
    %v149 = vsel %vm144, %v137, 0
    %151 = vmatpush.msra.mxu0 0.0
    %152 = vmatpush.msra.mxu0 0.0
    %153 = vmatpush.msra.mxu0 0.0
    %154 = vmatpush.msra.mxu0 0.0
    %155 = vmatpush.msra.mxu0 0.0
    %156 = vmatpush.msra.mxu0 0.0
    %157 = vmatpush.msra.mxu0 0.0
    %158 = vmatpush.msra.mxu0 0.0
    %159 = vmatpush.msra.mxu0 0.0
    %160 = vmatpush.msra.mxu0 0.0
    %161 = vmatpush.msra.mxu0 0.0
    %162 = vmatpush.msra.mxu0 0.0
    %163 = vmatpush.msra.mxu0 0.0
    %164 = vmatpush.msra.mxu0 0.0
    %165 = vmatpush.msra.mxu0 %v139
    %166 = vmatpush.msra.mxu0 %v138
    %167 = vmatmul.f32.gmra.mxu0 %v146
    %v168 = vpop.f32.mrf.mxu0
    %v169 = vadd.f32 %v142, %v168
    %170 = vmatmul.f32.gmra.mxu0 %v149
    %v171 = vpop.f32.mrf.mxu0
    %v172 = vadd.f32 %v142, %v171
    %173 = vdwg.mxu0
    %174 = vst.msk [vmem:[#allocation2] sm:$0xff] %vm41, %v169
    %175 = vst.msk [vmem:[#allocation2 + $0x8] sm:$0xff] %vm41, %v172
    // Predicated region
    $region30: #{tpu_custom_call.1} parent=1 // pred_check
      _
    $region31: #{tpu_custom_call.1} parent=1 // pred_check_branch
      %177 = sbr.rel (0) target = $region33
    $region32: #{tpu_custom_call.1} parent=1 // pred_region
      %179 = vsyncadd [#allocation3], 0
      %s180 = sshll.u32 [#allocation2], 4
      %s181 = int_to_ptr.vmem [resolvable:$true] %s180
      %s182 = sshll.u32 %s7, 4
      %s183 = int_to_ptr.hbm [resolvable:$true] %s182
      %188 = dma.vmem_to_hbm [thread:$0]  %s181, 256, %s183, [#allocation3], 128, 128, 8
    $region33: #{tpu_custom_call.1} parent=1 // pred_fallthru
      _
    // Predicated region
    $region34: #{tpu_custom_call.1} parent=1 // pred_check
      _
    $region35: #{tpu_custom_call.1} parent=1 // pred_check_branch
      %190 = sbr.rel (0) target = $region37
    $region36: #{tpu_custom_call.1} parent=1 // pred_region
      %192 = dma.done [#allocation3], 256
    $region37: #{tpu_custom_call.1} parent=1 // pred_fallthru
      _
    %193 = vsyncpa [#allocation3], 1

</llo_original>
